<compile_context>
chip_gen: v6e
topology: v6e:2x2x1
jax: 0.10.0
libtpu: 0.0.40
codegen_flags: <defaults>
</compile_context>

<pallas_src>
import jax
import jax.numpy as jnp
from jax import lax
from jax.experimental import pallas as pl
from jax.experimental.pallas import tpu as pltpu


# ----------------------------------------------------------------------------
# Kernels
# ----------------------------------------------------------------------------
def _proj_kernel(x_ref, w_ref, b_ref, out_ref):
    """Fused theta|phi|g 1x1-conv projection: (3*C_pad, C_in) @ (C_in, T) + b."""
    x = x_ref[0].astype(jnp.bfloat16)                            # (C_in, T)
    out_ref[0] = (jnp.dot(w_ref[...], x, preferred_element_type=jnp.float32)
                  + b_ref[...]).astype(out_ref.dtype)            # (3*C_pad, T)


def _attn_single_kernel(x_ref, th_ref, ph_ref, g_ref, ww_ref, bw_ref, z_ref):
    """Single-pass softmax over the full key axis (tk == N): no rescale, no scratch."""
    th = th_ref[0]                                               # (C_pad, TQ) bf16
    ph = ph_ref[0]                                               # (C_pad, N)  bf16
    g = g_ref[0]                                                 # (C_pad, N)  bf16

    # s_t[k, q] = sum_c ph[c, k] * th[c, q]  -> queries on lanes (lane-dense).
    s_t = lax.dot_general(ph, th, (((0,), (0,)), ((), ())),
                          preferred_element_type=jnp.float32)    # (N, TQ) f32
    m = jnp.max(s_t, axis=0, keepdims=True)                      # (1, TQ)
    p = jnp.exp(s_t - m)                                         # (N, TQ) f32
    l = jnp.sum(p, axis=0, keepdims=True)                        # (1, TQ)
    # Deep TK contraction; bf16 MXU operands, f32 accumulation.
    acc = jnp.dot(g, p.astype(jnp.bfloat16),
                  preferred_element_type=jnp.float32)            # (C_pad, TQ)
    y = acc * pl.reciprocal(l, approx=True)                      # (C_pad, TQ)
    w_y = jnp.dot(ww_ref[...], y, preferred_element_type=jnp.float32)  # (C_in, TQ)
    z_ref[0] = (w_y + bw_ref[...]
                + x_ref[0].astype(jnp.float32)).astype(z_ref.dtype)


def _attn_flash_kernel(x_ref, th_ref, ph_ref, g_ref, ww_ref, bw_ref, z_ref,
                       m_s, l_s, acc_s):
    """Flash-style online softmax with lane-dense state (m/l: (1,TQ), acc: (C_pad,TQ))."""
    ki = pl.program_id(2)

    @pl.when(ki == 0)
    def _init():
        m_s[...] = jnp.full(m_s.shape, -jnp.inf, dtype=m_s.dtype)
        l_s[...] = jnp.zeros(l_s.shape, dtype=l_s.dtype)
        acc_s[...] = jnp.zeros(acc_s.shape, dtype=acc_s.dtype)

    th = th_ref[0]                                               # (C_pad, TQ) bf16
    ph = ph_ref[0]                                               # (C_pad, TK) bf16
    g = g_ref[0]                                                 # (C_pad, TK) bf16

    s_t = lax.dot_general(ph, th, (((0,), (0,)), ((), ())),
                          preferred_element_type=jnp.float32)    # (TK, TQ)
    m_prev = m_s[...]                                            # (1, TQ)
    m_new = jnp.maximum(m_prev, jnp.max(s_t, axis=0, keepdims=True))
    alpha = jnp.exp(m_prev - m_new)                              # (1, TQ)
    p = jnp.exp(s_t - m_new)                                     # (TK, TQ) f32
    l_s[...] = alpha * l_s[...] + jnp.sum(p, axis=0, keepdims=True)
    acc_s[...] = alpha * acc_s[...] + jnp.dot(
        g, p.astype(jnp.bfloat16), preferred_element_type=jnp.float32)
    m_s[...] = m_new

    @pl.when(ki == pl.num_programs(2) - 1)
    def _finalize():
        y = acc_s[...] * pl.reciprocal(l_s[...], approx=True)    # (C_pad, TQ)
        w_y = jnp.dot(ww_ref[...], y, preferred_element_type=jnp.float32)
        z_ref[0] = (w_y + bw_ref[...]
                    + x_ref[0].astype(jnp.float32)).astype(z_ref.dtype)


# ----------------------------------------------------------------------------
# Wrapper
# ----------------------------------------------------------------------------
def _round_up(v, m):
    return (v + m - 1) // m * m


def _pad_rows(a, rows):
    pad = rows - a.shape[0]
    if pad <= 0:
        return a
    return jnp.concatenate([a, jnp.zeros((pad,) + a.shape[1:], a.dtype)], axis=0)


def _pad_cols(a, cols):
    pad = cols - a.shape[1]
    if pad <= 0:
        return a
    return jnp.concatenate([a, jnp.zeros((a.shape[0], pad), a.dtype)], axis=1)


def _pick_tq(n, b):
    cands = [t for t in (512, 256, 128) if n % t == 0]
    if not cands:
        return n
    for t in cands:
        if b * (n // t) >= 2:       # keep >= 2 parallel programs (v7x: 2 TCs)
            return t
    return cands[-1]


def _pick_tk(n):
    if n <= 1024:
        return n                    # collapse key loop: single-pass softmax
    for t in (512, 256, 128):
        if n % t == 0:
            return t
    return n


def non_local_block(x_nchw, params, *, tq=None, tk=None):
    B, C_in, H, W = x_nchw.shape
    N = H * W
    C_out = params["wt"].shape[0]
    C_pad = _round_up(C_out, 8)     # sublane-aligned per-projection block

    x_bcn = x_nchw.reshape(B, C_in, N)

    tq = _pick_tq(N, B) if tq is None else tq
    tk = _pick_tk(N) if tk is None else tk
    assert N % tq == 0 and N % tk == 0, "spatial size must be divisible by tiles"

    # --- weight prep: fused, row-padded projection weights --------------------
    w_all = jnp.concatenate(
        [_pad_rows(params["wt"].astype(jnp.float32), C_pad),
         _pad_rows(params["wp"].astype(jnp.float32), C_pad),
         _pad_rows(params["wg"].astype(jnp.float32), C_pad)],
        axis=0).astype(jnp.bfloat16)                             # (3*C_pad, C_in)
    b_all = jnp.concatenate(
        [_pad_rows(params["bt"].astype(jnp.float32), C_pad),
         _pad_rows(params["bp"].astype(jnp.float32), C_pad),
         _pad_rows(params["bg"].astype(jnp.float32), C_pad)],
        axis=0)                                                  # (3*C_pad, 1) f32
    ww_pad = _pad_cols(params["ww"].astype(jnp.float32), C_pad)  # (C_in, C_pad) f32
    bw = params["bw"].astype(jnp.float32)                        # (C_in, 1)

    # --- projection pass (theta | phi | g), hoisted out of the attention loop -
    tp = tq
    tpg = pl.pallas_call(
        _proj_kernel,
        out_shape=jax.ShapeDtypeStruct((B, 3 * C_pad, N), jnp.bfloat16),
        grid_spec=pltpu.PrefetchScalarGridSpec(
            num_scalar_prefetch=0,
            grid=(B, N // tp),
            in_specs=[
                pl.BlockSpec((1, C_in, tp), lambda b, i: (b, 0, i)),
                pl.BlockSpec((3 * C_pad, C_in), lambda b, i: (0, 0)),
                pl.BlockSpec((3 * C_pad, 1), lambda b, i: (0, 0)),
            ],
            out_specs=pl.BlockSpec((1, 3 * C_pad, tp), lambda b, i: (b, 0, i)),
        ),
        compiler_params=pltpu.CompilerParams(
            dimension_semantics=("parallel", "parallel")),
    )(x_bcn, w_all, b_all)

    cost = pl.CostEstimate(
        flops=2 * B * (2 * N * N * C_pad + N * C_pad * C_in),
        transcendentals=B * N * N,
        bytes_accessed=int(B * N * (2 * C_in * 4 + 3 * C_pad * 2)))

    if tk == N:
        # Single-pass softmax: no key loop, no online-softmax rescale.
        out = pl.pallas_call(
            _attn_single_kernel,
            out_shape=jax.ShapeDtypeStruct((B, C_in, N), x_nchw.dtype),
            grid_spec=pltpu.PrefetchScalarGridSpec(
                num_scalar_prefetch=0,
                grid=(B, N // tq),
                in_specs=[
                    pl.BlockSpec((1, C_in, tq), lambda b, qi: (b, 0, qi)),   # x
                    pl.BlockSpec((1, C_pad, tq), lambda b, qi: (b, 0, qi)),  # theta
                    pl.BlockSpec((1, C_pad, N), lambda b, qi: (b, 1, 0)),    # phi
                    pl.BlockSpec((1, C_pad, N), lambda b, qi: (b, 2, 0)),    # g
                    pl.BlockSpec((C_in, C_pad), lambda b, qi: (0, 0)),       # ww
                    pl.BlockSpec((C_in, 1), lambda b, qi: (0, 0)),           # bw
                ],
                out_specs=pl.BlockSpec((1, C_in, tq), lambda b, qi: (b, 0, qi)),
            ),
            compiler_params=pltpu.CompilerParams(
                dimension_semantics=("parallel", "parallel"),
                vmem_limit_bytes=40 * 1024 * 1024),
            cost_estimate=cost,
        )(x_bcn, tpg, tpg, tpg, ww_pad, bw)
    else:
        # Flash path for large N, lane-dense softmax state.
        out = pl.pallas_call(
            _attn_flash_kernel,
            out_shape=jax.ShapeDtypeStruct((B, C_in, N), x_nchw.dtype),
            grid_spec=pltpu.PrefetchScalarGridSpec(
                num_scalar_prefetch=0,
                grid=(B, N // tq, N // tk),
                in_specs=[
                    pl.BlockSpec((1, C_in, tq), lambda b, qi, ki: (b, 0, qi)),
                    pl.BlockSpec((1, C_pad, tq), lambda b, qi, ki: (b, 0, qi)),
                    pl.BlockSpec((1, C_pad, tk), lambda b, qi, ki: (b, 1, ki)),
                    pl.BlockSpec((1, C_pad, tk), lambda b, qi, ki: (b, 2, ki)),
                    pl.BlockSpec((C_in, C_pad), lambda b, qi, ki: (0, 0)),
                    pl.BlockSpec((C_in, 1), lambda b, qi, ki: (0, 0)),
                ],
                out_specs=pl.BlockSpec((1, C_in, tq),
                                       lambda b, qi, ki: (b, 0, qi)),
                scratch_shapes=[
                    pltpu.VMEM((1, tq), jnp.float32),      # m: running max (row)
                    pltpu.VMEM((1, tq), jnp.float32),      # l: running denom (row)
                    pltpu.VMEM((C_pad, tq), jnp.float32),  # acc (lane-dense)
                ],
            ),
            compiler_params=pltpu.CompilerParams(
                dimension_semantics=("parallel", "parallel", "arbitrary"),
                vmem_limit_bytes=40 * 1024 * 1024),
            cost_estimate=cost,
        )(x_bcn, tpg, tpg, tpg, ww_pad, bw)

    return out.reshape(B, C_in, H, W)


# ----------------------------------------------------------------------------
# Parameters & pure-JAX reference
# ----------------------------------------------------------------------------
def init_params(key, in_channel, out_channel):
    # PyTorch Conv2d default init: U(-1/sqrt(fan_in), 1/sqrt(fan_in)).
    ks = jax.random.split(key, 6)
    bound = 1.0 / (in_channel ** 0.5)
    u = lambda k, shape: jax.random.uniform(k, shape, jnp.float32, -bound, bound)
    return {
        "wg": u(ks[0], (out_channel, in_channel)),
        "bg": u(ks[1], (out_channel, 1)),
        "wt": u(ks[2], (out_channel, in_channel)),
        "bt": u(ks[3], (out_channel, 1)),
        "wp": u(ks[4], (out_channel, in_channel)),
        "bp": u(ks[5], (out_channel, 1)),
        # nn.init.constant_(W.weight, 0); nn.init.constant_(W.bias, 0)
        "ww": jnp.zeros((in_channel, out_channel), jnp.float32),
        "bw": jnp.zeros((in_channel, 1), jnp.float32),
    }


def _reference(x_nchw, params):
    B, C_in, H, W = x_nchw.shape
    N = H * W
    x = x_nchw.reshape(B, C_in, N).astype(jnp.float32)
    conv = lambda w, b, inp: jnp.einsum("oc,bcn->bon", w, inp) + b[None]
    g_x = conv(params["wg"], params["bg"], x)
    th = conv(params["wt"], params["bt"], x)
    ph = conv(params["wp"], params["bp"], x)
    f1 = jnp.einsum("bcq,bck->bqk", th, ph)
    attn = jax.nn.softmax(f1, axis=-1)
    y = jnp.einsum("bqk,bdk->bdq", attn, g_x)
    w_y = jnp.einsum("cd,bdq->bcq", params["ww"], y) + params["bw"][None]
    return (w_y + x).reshape(B, C_in, H, W)


if __name__ == "__main__":
    B, C_in, C_out, H, W = 2, 4, 4, 16, 16
    key = jax.random.PRNGKey(0)
    kx, kp, kw, kb = jax.random.split(key, 4)
    x = jax.random.normal(kx, (B, C_in, H, W), jnp.float32)

    # 1) Module-faithful parameters (W conv zero-initialized, as in the spec),
    #    default tiles -> single-pass softmax path (tk = N = 256, tq = 256).
    params = init_params(kp, C_in, C_out)
    out = jax.block_until_ready(non_local_block(x, params))
    ref = _reference(x, params)
    assert out.shape == (B, C_in, H, W)
    assert jnp.allclose(out, ref, atol=1e-5, rtol=1e-5), "mismatch (zero-W path)"

    # 2) Non-zero W projection so the attention path reaches the output
    #    (validates the single-pass softmax; bf16 MXU -> relaxed tolerance).
    bound = 1.0 / (C_out ** 0.5)
    params_nz = dict(
        params,
        ww=jax.random.uniform(kw, (C_in, C_out), jnp.float32, -bound, bound),
        bw=jax.random.uniform(kb, (C_in, 1), jnp.float32, -bound, bound))
    out2 = jax.block_until_ready(non_local_block(x, params_nz))
    ref2 = _reference(x, params_nz)
    rel_err = jnp.linalg.norm(out2 - ref2) / jnp.linalg.norm(ref2)
    assert float(rel_err) < 3e-2, f"single-pass relative error too large: {float(rel_err)}"

    # 3) Force tiled key loop (tq = tk = 128) to validate the lane-dense
    #    flash/online-softmax path used for large N.
    out3 = jax.block_until_ready(non_local_block(x, params_nz, tq=128, tk=128))
    rel_err3 = jnp.linalg.norm(out3 - ref2) / jnp.linalg.norm(ref2)
    assert float(rel_err3) < 3e-2, f"flash-path relative error too large: {float(rel_err3)}"

    print("KERNEL_OK")
</pallas_src>

<mosaic_0001>
module attributes {stable_mosaic.version = 11 : i64} {
  func.func @_proj_kernel(%arg0: i32, %arg1: i32, %arg2: memref<1x4x256xf32, #tpu.memory_space<vmem>>, %arg3: memref<24x4xbf16, #tpu.memory_space<vmem>>, %arg4: memref<24x1xf32, #tpu.memory_space<vmem>>, %arg5: memref<1x24x256xbf16, #tpu.memory_space<vmem>>) attributes {dimension_semantics = [#tpu.dimension_semantics<parallel>, #tpu.dimension_semantics<parallel>], iteration_bounds = array<i64: 2, 1>, scalar_prefetch = 0 : i64, scratch_operands = 0 : i64, tpu.core_type = #tpu.core_type<tc>, window_params = [{transform_indices = @transform_0, window_bounds = array<i64: 1, 4, 256>}, {pipeline_mode = #tpu.pipeline_mode<synchronous>, transform_indices = @transform_1, window_bounds = array<i64: 24, 4>}, {pipeline_mode = #tpu.pipeline_mode<synchronous>, transform_indices = @transform_2, window_bounds = array<i64: 24, 1>}, {transform_indices = @transform_3, window_bounds = array<i64: 1, 24, 256>}]} {
    %c0 = arith.constant 0 : index
    %c0_0 = arith.constant 0 : index
    %c0_1 = arith.constant 0 : index
    %0 = vector.load %arg2[%c0, %c0_0, %c0_1] : memref<1x4x256xf32, #tpu.memory_space<vmem>>, vector<1x4x256xf32>
    %1 = vector.shape_cast %0 : vector<1x4x256xf32> to vector<4x256xf32>
    %2 = arith.truncf %1 : vector<4x256xf32> to vector<4x256xbf16>
    %c0_2 = arith.constant 0 : index
    %c0_3 = arith.constant 0 : index
    %3 = vector.load %arg3[%c0_2, %c0_3] : memref<24x4xbf16, #tpu.memory_space<vmem>>, vector<24x4xbf16>
    %cst = arith.constant dense<0.000000e+00> : vector<24x256xf32>
    %4 = tpu.matmul %3, %2, %cst {dimension_numbers = #tpu.dot_dimension_numbers<[1], [0], [0], [1], [0, 0, 1, 1], [], []>} : vector<24x4xbf16>, vector<4x256xbf16>, vector<24x256xf32> -> vector<24x256xf32>
    %c0_4 = arith.constant 0 : index
    %c0_5 = arith.constant 0 : index
    %5 = vector.load %arg4[%c0_4, %c0_5] : memref<24x1xf32, #tpu.memory_space<vmem>>, vector<24x1xf32>
    %6 = vector.broadcast %5 : vector<24x1xf32> to vector<24x256xf32>
    %7 = arith.addf %4, %6 : vector<24x256xf32>
    %8 = arith.truncf %7 : vector<24x256xf32> to vector<24x256xbf16>
    %c0_6 = arith.constant 0 : index
    %c0_7 = arith.constant 0 : index
    %c0_8 = arith.constant 0 : index
    %9 = vector.load %arg5[%c0_6, %c0_7, %c0_8] : memref<1x24x256xbf16, #tpu.memory_space<vmem>>, vector<1x24x256xbf16>
    %10 = vector.shape_cast %9 : vector<1x24x256xbf16> to vector<24x256xbf16>
    %11 = vector.shape_cast %8 : vector<24x256xbf16> to vector<1x24x256xbf16>
    tpu.vector_store %arg5[%c0_6, %c0_7, %c0_8], %11 {strides = array<i32>} : memref<1x24x256xbf16, #tpu.memory_space<vmem>>, vector<1x24x256xbf16>,
    return
  }
  func.func @transform_0(%arg0: i32, %arg1: i32) -> (i32, i32, i32) {
    %c0_i32 = arith.constant 0 : i32
    %c0_i32_0 = arith.constant 0 : i32
    return %arg0, %c0_i32, %arg1 : i32, i32, i32
  }
  func.func @transform_1(%arg0: i32, %arg1: i32) -> (i32, i32) {
    %c0_i32 = arith.constant 0 : i32
    %c0_i32_0 = arith.constant 0 : i32
    %c0_i32_1 = arith.constant 0 : i32
    return %c0_i32, %c0_i32_0 : i32, i32
  }
  func.func @transform_2(%arg0: i32, %arg1: i32) -> (i32, i32) {
    %c0_i32 = arith.constant 0 : i32
    %c0_i32_0 = arith.constant 0 : i32
    %c0_i32_1 = arith.constant 0 : i32
    return %c0_i32, %c0_i32_0 : i32, i32
  }
  func.func @transform_3(%arg0: i32, %arg1: i32) -> (i32, i32, i32) {
    %c0_i32 = arith.constant 0 : i32
    %c0_i32_0 = arith.constant 0 : i32
    return %arg0, %c0_i32, %arg1 : i32, i32, i32
  }
}

</mosaic_0001>

<llo_original>
// kernel: tpu_custom_call.1
$region0: #{tpu_custom_call.1}
  #allocation0 [shape = 'u32[]', space=smem, size = 0x4, offset = 0x4, fixed_abs, tag = 'smem constant byte address 0x4 - core index']
  #allocation1 [shape = 'u32[144,128]{1,0:T(1,128)}', space=vmem, size = 0x12000, scoped, tag = 'internal scratch']
  %s0 = inlined_call_operand.vmem [shape: f32[2,4,256], index: 0, kind: input, shape index: {}]
  %s1 = inlined_call_operand.vmem [shape: bf16[24,4], index: 1, kind: input, shape index: {}]
  %s2 = inlined_call_operand.vmem [shape: f32[24,1], index: 2, kind: input, shape index: {}]
  %s3 = inlined_call_operand.hbm [shape: bf16[2,24,256], index: 3, kind: output, shape index: {}]
  %s4 = sld [smem:[#allocation0]]
  $region45: #{tpu_custom_call.1} parent=0
    _
  %s6 = ssub.s32 1, %s4
  %s7 = scalar_select 0, %s6, %s4
  $region1: #{tpu_custom_call.1} parent=0
    #allocation2 [shape = 'u8[24576]{0}', space=vmem, size = 0x6000, scoped, tag = 'output window, operand 0']
    #allocation3 [shape = 's32[2]{0}', space=sflag, size = 0x8, scoped, tag = 'scoped memory for tpu_custom_call.1']
    %8 = vsyncpa [#allocation3], 0
    %s9 = scalar_lea.sflag [#allocation3], 1
    %10 = vsyncpa %s9, 0
    loop: start=0, step=1, limit=4
    $region2: #{tpu_custom_call.1} parent=1 // loop_pre_header
      _
    $region3: #{tpu_custom_call.1} parent=1 // loop_header
      %s12 = sphi 0, %s16
      %p13 = scmp.ge.s32.totalorder %s12, 4
      %s19 = sphi 0, %s31
      %s20 = sphi 0, %s27
      %s21 = sphi 0, %s19
      %s22 = sphi 0, %s20
      %s23 = sphi 0, %s21
      %s24 = sphi 0, %s22
      %s36 = sphi 0, %s38
      %s39 = sphi 0, %s36
      %s40 = sphi 0, %s39
      %s56 = sphi 0, %s40
      %s60 = sphi 0, %s60
      %s62 = sphi 0, %s60
      %s63 = sphi 0, %s62
      %s77 = sphi 0, %s63
      %s81 = sphi 0, %s81
      %s83 = sphi 0, %s81
      %s84 = sphi 0, %s83
      %s98 = sphi 0, %s84
      %s106 = sphi 0, %s108
      %s109 = sphi 0, %s106
      %s110 = sphi 0, %s109
      %s126 = sphi 0, %s110
    $region4: #{tpu_custom_call.1} parent=1 // loop_header_branch
      %15 = sbr.rel (%p13) target = $region8
    $region5: #{tpu_custom_call.1} parent=1 // loop_body
      %s17 = ssub.s32 %s12, 1
      %s18 = ssub.s32 %s12, 2
      %s25 = sadd.s32 1, %s20
      %p26 = scmp.ge.s32.totalorder %s25, 1
      %s27 = scalar_select %p26, 0, %s25
      %s28 = sadd.s32 1, %s19
      %s29 = scalar_select %p26, %s28, %s19
      %p30 = scmp.ge.s32.totalorder %s29, 2
      %s31 = scalar_select %p30, 0, %s29
      %s32 = ssub.s32 %s19, %s31
      %s33 = ssub.s32 %s20, %s27
      %s34 = sor.u32 %s32, %s33
      %p35 = scmp.eq.s32.totalorder %s34, 0
      %s37 = sadd.s32 %s36, 1
      %s38 = scalar_select %p35, %s36, %s37
      %p41 = pneg %p35
      %p42 = scmp.eq.s32.totalorder %s12, 1
      %p43 = por %p41, %p42
      %p44 = scmp.ne.s32.totalorder %s36, %s39
      %p45 = scmp.eq.s32.totalorder %s12, 0
      %p46 = por %p44, %p45
      %p47 = scmp.ne.s32.totalorder %s36, %s39
      %p48 = scmp.eq.s32.totalorder %s17, 1
      %p49 = por %p47, %p48
      %p50 = scmp.ne.s32.totalorder %s39, %s40
      %p51 = scmp.eq.s32.totalorder %s17, 0
      %p52 = por %p50, %p51
      %p53 = scmp.ne.s32.totalorder %s39, %s40
      %p54 = scmp.eq.s32.totalorder %s18, 1
      %p55 = por %p53, %p54
      %p57 = scmp.ne.s32.totalorder %s40, %s56
      %p58 = scmp.eq.s32.totalorder %s18, 0
      %p59 = por %p57, %p58
      %s61 = sadd.s32 %s60, 1
      %p64 = scmp.eq.s32.totalorder %s12, 1
      %p65 = scmp.ne.s32.totalorder %s60, %s62
      %p66 = scmp.eq.s32.totalorder %s12, 0
      %p67 = por %p65, %p66
      %p68 = scmp.ne.s32.totalorder %s60, %s62
      %p69 = scmp.eq.s32.totalorder %s17, 1
      %p70 = por %p68, %p69
      %p71 = scmp.ne.s32.totalorder %s62, %s63
      %p72 = scmp.eq.s32.totalorder %s17, 0
      %p73 = por %p71, %p72
      %p74 = scmp.ne.s32.totalorder %s62, %s63
      %p75 = scmp.eq.s32.totalorder %s18, 1
      %p76 = por %p74, %p75
      %p78 = scmp.ne.s32.totalorder %s63, %s77
      %p79 = scmp.eq.s32.totalorder %s18, 0
      %p80 = por %p78, %p79
      %s82 = sadd.s32 %s81, 1
      %p85 = scmp.eq.s32.totalorder %s12, 1
      %p86 = scmp.ne.s32.totalorder %s81, %s83
      %p87 = scmp.eq.s32.totalorder %s12, 0
      %p88 = por %p86, %p87
      %p89 = scmp.ne.s32.totalorder %s81, %s83
      %p90 = scmp.eq.s32.totalorder %s17, 1
      %p91 = por %p89, %p90
      %p92 = scmp.ne.s32.totalorder %s83, %s84
      %p93 = scmp.eq.s32.totalorder %s17, 0
      %p94 = por %p92, %p93
      %p95 = scmp.ne.s32.totalorder %s83, %s84
      %p96 = scmp.eq.s32.totalorder %s18, 1
      %p97 = por %p95, %p96
      %p99 = scmp.ne.s32.totalorder %s84, %s98
      %p100 = scmp.eq.s32.totalorder %s18, 0
      %p101 = por %p99, %p100
      %s102 = ssub.s32 %s19, %s31
      %s103 = ssub.s32 %s20, %s27
      %s104 = sor.u32 %s102, %s103
      %p105 = scmp.eq.s32.totalorder %s104, 0
      %s107 = sadd.s32 %s106, 1
      %s108 = scalar_select %p105, %s106, %s107
      %p111 = pneg %p105
      %p112 = scmp.eq.s32.totalorder %s12, 1
      %p113 = por %p111, %p112
      %p114 = scmp.ne.s32.totalorder %s106, %s109
      %p115 = scmp.eq.s32.totalorder %s12, 0
      %p116 = por %p114, %p115
      %p117 = scmp.ne.s32.totalorder %s106, %s109
      %p118 = scmp.eq.s32.totalorder %s17, 1
      %p119 = por %p117, %p118
      %p120 = scmp.ne.s32.totalorder %s109, %s110
      %p121 = scmp.eq.s32.totalorder %s17, 0
      %p122 = por %p120, %p121
      %p123 = scmp.ne.s32.totalorder %s109, %s110
      %p124 = scmp.eq.s32.totalorder %s18, 1
      %p125 = por %p123, %p124
      %p127 = scmp.ne.s32.totalorder %s110, %s126
      %p128 = scmp.eq.s32.totalorder %s18, 0
      %p129 = por %p127, %p128
      %p130 = scmp.le.s32.totalorder 1, %s12
      %p131 = scmp.lt.s32.totalorder %s12, 3
      %p132 = pnand %p130, %p131
      %p133 = pneg %p132
      // Predicated region
      $region9: #{tpu_custom_call.1} parent=5 // pred_check
        _
      $region10: #{tpu_custom_call.1} parent=5 // pred_check_branch
        %135 = sbr.rel (%p132) target = $region12
      $region11: #{tpu_custom_call.1} parent=5 // pred_region
        %s136 = ssub.s32 %s12, 1
        // Predicated region
        $region13: #{tpu_custom_call.1} parent=11 // pred_check
          %p137 = pneg %p73
        $region14: #{tpu_custom_call.1} parent=11 // pred_check_branch
          %139 = sbr.rel (%p137) target = $region16
        $region15: #{tpu_custom_call.1} parent=11 // pred_region
          _
        $region16: #{tpu_custom_call.1} parent=11 // pred_fallthru
          _
        // Predicated region
        $region17: #{tpu_custom_call.1} parent=11 // pred_check
          %p140 = pneg %p94
        $region18: #{tpu_custom_call.1} parent=11 // pred_check_branch
          %142 = sbr.rel (%p140) target = $region20
        $region19: #{tpu_custom_call.1} parent=11 // pred_region
          _
        $region20: #{tpu_custom_call.1} parent=11 // pred_fallthru
          _
      $region12: #{tpu_custom_call.1} parent=5 // pred_fallthru
        _
      %p143 = scmp.lt.s32.totalorder %s12, 2
      // Predicated region
      $region21: #{tpu_custom_call.1} parent=5 // pred_check
        %p144 = pneg %p143
      $region22: #{tpu_custom_call.1} parent=5 // pred_check_branch
        %146 = sbr.rel (%p144) target = $region24
      $region23: #{tpu_custom_call.1} parent=5 // pred_region
        // Predicated region
        $region25: #{tpu_custom_call.1} parent=23 // pred_check
          %p147 = pneg %p46
        $region26: #{tpu_custom_call.1} parent=23 // pred_check_branch
          %149 = sbr.rel (%p147) target = $region28
        $region27: #{tpu_custom_call.1} parent=23 // pred_region
          %s150 = smul.u32 2, %s20
          %p151 = scmp.lt.s32.totalorder %s19, 1
          %s152 = scalar_select %p151, %s19, 1
          %p153 = scmp.lt.s32.totalorder %s150, 1
          %s154 = scalar_select %p153, %s150, 1
          %s155 = smul.addr %s152, 2
          %s156 = sadd.s32 %s154, %s155
          %s157 = smul.addr %s156, 4
          %s158 = scalar_lea.vmem %s0, %s157
          %s159 = smul.u32 2, %s20
        $region28: #{tpu_custom_call.1} parent=23 // pred_fallthru
          _
      $region24: #{tpu_custom_call.1} parent=5 // pred_fallthru
        _
      %p160 = scmp.le.s32.totalorder 1, %s12
      %p161 = scmp.lt.s32.totalorder %s12, 3
      %p162 = pnand %p160, %p161
      %p163 = pneg %p162
      // Predicated region
      $region29: #{tpu_custom_call.1} parent=5 // pred_check
        _
      $region30: #{tpu_custom_call.1} parent=5 // pred_check_branch
        %165 = sbr.rel (%p162) target = $region32
      $region31: #{tpu_custom_call.1} parent=5 // pred_region
        %s166 = ssub.s32 %s12, 1
        %s167 = smul.u32 2, %s22
        %p168 = scmp.lt.s32.totalorder %s21, 1
        %s169 = scalar_select %p168, %s21, 1
        %p170 = scmp.lt.s32.totalorder %s167, 1
        %s171 = scalar_select %p170, %s167, 1
        %s172 = smul.addr %s169, 2
        %s173 = sadd.s32 %s171, %s172
        %s174 = smul.addr %s173, 4
        %s175 = scalar_lea.vmem %s0, %s174
        %p176 = pneg %p52
        %p177 = pneg %p49
        %p178 = pneg %p73
        %p179 = pneg %p70
        %p180 = pneg %p94
        %p181 = pneg %p91
        %p182 = pneg %p122
        %p183 = pneg %p119
        %s184 = sand.u32 %s109, 1
        %s185 = scalar_lea.sflag [#allocation3], %s184
        %s186 = sand.u32 %s109, 1
        %s187 = smul.addr %s186, 24
        %s188 = scalar_lea.vmem [#allocation2], %s187
        %s189 = smul.u32 2, %s22
        %p190 = scmp.lt.s32.totalorder %s21, 1
        %s191 = scalar_select %p190, %s21, 1
        %p192 = scmp.lt.s32.totalorder %s189, 1
        %s193 = scalar_select %p192, %s189, 1
        %s194 = smul.addr %s191, 2
        %s195 = sadd.s32 %s193, %s194
        %s196 = smul.addr %s195, 4
        %s197 = scalar_lea.vmem %s0, %s196
        %s198 = smul.u32 2, %s22
        %s199 = smul.u32 2, %s22
        %v201 = vld [vmem:[%s197] sm:$0xff]
        %v203 = vcombine.high %v201, %v201
        %v205 = vpack.c.bf16 %v201, %v201
        %v206 = vpack.c.bf16 %v203, %v203
        %v207 = vld [vmem:[%s1] sm:$0xf]
        %v208 = vld [vmem:[%s1 + $0x4] sm:$0xf]
        %v209 = vld [vmem:[%s1 + $0x8] sm:$0xf]
        %v210 = vld [vmem:[%s2] sm:$0xff]
        %v211 = vld [vmem:[%s2 + $0x8] sm:$0xff]
        %v212 = vld [vmem:[%s2 + $0x10] sm:$0xff]
        %214 = vset.pattern.permute.xlu0 0
        %215 = vperm.xlu0 %214, %v210
        %v216 = vpop.permute.xlu0 %215
        %219 = vset.pattern.permute.xlu0 0
        %220 = vperm.xlu0 %219, %v211
        %v221 = vpop.permute.xlu0 %220
        %224 = vset.pattern.permute.xlu0 0
        %225 = vperm.xlu0 %224, %v212
        %v226 = vpop.permute.xlu0 %225
        %v231 = vunpack.c.l.b16 %v207
        %v232 = vunpack.c.l.b16 %v208
        %v233 = vunpack.c.l.b16 %v209
        %v234 = vpack.c.b16 %v232, %v231
        %v235 = vpack.c.b16 %v233, %v233
        %vm236 = vcmask 31744
        %v238 = vsel %vm236, %v234, 0
        %v241 = vsel %vm236, %v235, 0
        %vm243 = vcmask 1041408
        %v245 = vsel %vm243, %v205, 0
        %v248 = vsel %vm243, %v206, 0
        %250 = vmatprep.subr.bf16.mxu0 0
        %251 = vmatpush1.bf16.msra.mxu0 0
        %252 = vmatprep.subr.bf16.mxu0 0
        %253 = vmatpush1.bf16.msra.mxu0 0
        %254 = vmatprep.subr.bf16.mxu0 0
        %255 = vmatpush1.bf16.msra.mxu0 0
        %256 = vmatprep.subr.bf16.mxu0 0
        %257 = vmatpush1.bf16.msra.mxu0 0
        %258 = vmatprep.subr.bf16.mxu0 0
        %259 = vmatpush1.bf16.msra.mxu0 0
        %260 = vmatprep.subr.bf16.mxu0 0
        %261 = vmatpush1.bf16.msra.mxu0 0
        %262 = vmatprep.subr.bf16.mxu0 0
        %263 = vmatpush1.bf16.msra.mxu0 0
        %264 = vmatprep.subr.bf16.mxu0 %v248
        %265 = vmatpush1.bf16.msra.mxu0 %v245
        %266 = vmatprep.subr.bf16.mxu0 0
        %267 = vmatpush2.bf16.msra.mxu0 0
        %268 = vmatprep.subr.bf16.mxu0 0
        %269 = vmatpush2.bf16.msra.mxu0 0
        %270 = vmatprep.subr.bf16.mxu0 0
        %271 = vmatpush2.bf16.msra.mxu0 0
        %272 = vmatprep.subr.bf16.mxu0 0
        %273 = vmatpush2.bf16.msra.mxu0 0
        %274 = vmatprep.subr.bf16.mxu0 0
        %275 = vmatpush2.bf16.msra.mxu0 0
        %276 = vmatprep.subr.bf16.mxu0 0
        %277 = vmatpush2.bf16.msra.mxu0 0
        %278 = vmatprep.subr.bf16.mxu0 0
        %279 = vmatpush2.bf16.msra.mxu0 0
        %280 = vmatprep.subr.bf16.mxu0 0
        %281 = vmatpush2.bf16.msra.mxu0 0
        %282 = vmatprep.mubr.bf16.mxu0 0
        %283 = vmatmul.mubr.bf16.gmra.mxu0 %v238
        %v284 = vpop.f32.mrf.mxu0
        %v285 = vadd.f32 %v216, %v284
        %v286 = vpop.f32.mrf.mxu0
        %v287 = vadd.f32 %v216, %v286
        %v288 = vpop.f32.mrf.mxu0
        %v289 = vadd.f32 %v221, %v288
        %v290 = vpop.f32.mrf.mxu0
        %v291 = vadd.f32 %v221, %v290
        %292 = vmatprep.mubr.bf16.mxu0 0
        %293 = vmatmul.mubr.bf16.gmra.mxu0 %v241
        %v294 = vpop.f32.mrf.mxu0
        %v295 = vadd.f32 %v226, %v294
        %v296 = vpop.f32.mrf.mxu0
        %v297 = vadd.f32 %v226, %v296
        %v298 = vpop.f32.mrf.mxu0
        %v299 = vpop.f32.mrf.mxu0
        %300 = vdwg.mxu0
        %v301 = vpack.c.bf16 %v289, %v285
        %v302 = vpack.c.bf16 %v291, %v287
        %v303 = vpack.c.bf16 %v295, %v295
        %v304 = vpack.c.bf16 %v297, %v297
        %v309 = vunpack.c.l.b16 %v301
        %v310 = vunpack.c.l.b16 %v302
        %v311 = vunpack.c.h.b16 %v301
        %v312 = vunpack.c.h.b16 %v302
        %v313 = vunpack.c.l.b16 %v303
        %v314 = vunpack.c.l.b16 %v304
        %v315 = vpack.c.b16 %v310, %v309
        %v316 = vpack.c.b16 %v312, %v311
        %v317 = vpack.c.b16 %v314, %v313
        %321 = vst [vmem:[%s188] sm:$0xff] %v315
        %322 = vst [vmem:[%s188 + $0x8] sm:$0xff] %v316
        %323 = vst [vmem:[%s188 + $0x10] sm:$0xff] %v317
        %s324 = sand.u32 %s109, 1
        %s325 = scalar_lea.sflag [#allocation3], %s324
        %s326 = sand.u32 %s109, 1
        %s327 = smul.addr %s326, 24
        %s328 = scalar_lea.vmem [#allocation2], %s327
        // Predicated region
        $region33: #{tpu_custom_call.1} parent=31 // pred_check
          %p329 = pneg %p119
        $region34: #{tpu_custom_call.1} parent=31 // pred_check_branch
          %331 = sbr.rel (%p329) target = $region36
        $region35: #{tpu_custom_call.1} parent=31 // pred_region
          %s332 = smul.u32 2, %s22
          %s334 = ssub.s32 384, 384
          %335 = vsyncadd %s325, %s334
          %s336 = smul.addr %s21, 6
          %s337 = sadd.s32 %s332, %s336
          %s338 = smul.addr %s337, 64
          %s339 = scalar_lea.hbm %s3, %s338
          %s340 = sshll.u32 %s328, 4
          %s341 = int_to_ptr.vmem [resolvable:$true] %s340
          %346 = dma.vmem_to_hbm [thread:$0]  %s341, 384, %s339, %s325, 128, 128, 8
        $region36: #{tpu_custom_call.1} parent=31 // pred_fallthru
          _
      $region32: #{tpu_custom_call.1} parent=5 // pred_fallthru
        _
      %p347 = scmp.le.s32.totalorder 2, %s12
      // Predicated region
      $region37: #{tpu_custom_call.1} parent=5 // pred_check
        %p348 = pneg %p347
      $region38: #{tpu_custom_call.1} parent=5 // pred_check_branch
        %350 = sbr.rel (%p348) target = $region40
      $region39: #{tpu_custom_call.1} parent=5 // pred_region
        %s351 = ssub.s32 %s12, 2
        // Predicated region
        $region41: #{tpu_custom_call.1} parent=39 // pred_check
          %p352 = pneg %p125
        $region42: #{tpu_custom_call.1} parent=39 // pred_check_branch
          %354 = sbr.rel (%p352) target = $region44
        $region43: #{tpu_custom_call.1} parent=39 // pred_region
          %s355 = sand.u32 %s110, 1
          %s356 = scalar_lea.sflag [#allocation3], %s355
          %s357 = sand.u32 %s110, 1
          %s358 = smul.addr %s357, 24
          %s359 = scalar_lea.vmem [#allocation2], %s358
          %360 = dma.done %s356, 384
        $region44: #{tpu_custom_call.1} parent=39 // pred_fallthru
          _
      $region40: #{tpu_custom_call.1} parent=5 // pred_fallthru
        _
    $region6: #{tpu_custom_call.1} parent=1 // loop_footer
      %s16 = sadd.s32 1, %s12
    $region7: #{tpu_custom_call.1} parent=1 // loop_footer_branch
      %11 = sbr.rel target = $region3
    $region8: #{tpu_custom_call.1} parent=1 // loop_exit
      _
    %361 = vsyncpa [#allocation3], 1
    %s362 = scalar_lea.sflag [#allocation3], 1
    %363 = vsyncpa %s362, 1

</llo_original>
